<compile_context>
chip_gen: v7x
topology: tpu7x:2x2x1
jax: 0.10.0
libtpu: 0.0.40
codegen_flags: <defaults>
</compile_context>

<pallas_src>
import jax
import jax.numpy as jnp
from jax.experimental import pallas as pl
from jax.experimental.pallas import tpu as pltpu


# ----------------------------- kernel -------------------------------------- #

def ext_memory_kernel(emb_ref, reader_ref, mask_ref, emb_out_ref, mask_out_ref):
    """Fused: append reader tokens to embeddings, prepend ones to the mask.

    Block shapes:
      emb_ref:      (TB, L, H)
      reader_ref:   (1,  R, H)   (shared parameter, same block every step)
      mask_ref:     (TB, 1, L)
      emb_out_ref:  (TB, L + R, H)
      mask_out_ref: (TB, 1, R + L)
    """
    tb, l, h = emb_ref.shape
    r = reader_ref.shape[1]

    # Two direct slab stores (no in-register concatenate, no materialized
    # (TB, L+R, H) intermediate).  Each output region is written exactly once;
    # OOB rows of a ragged last batch block are handled by the store masks.
    emb_out_ref[:, :l, :] = emb_ref[...]
    emb_out_ref[:, l:, :] = jnp.broadcast_to(reader_ref[...], (tb, r, h))

    # Mask: [ones(TB, R) , mask(TB, L)] along the last (lane) axis.
    mask_out_ref[:, :, :r] = jnp.ones((tb, 1, r), dtype=mask_out_ref.dtype)
    mask_out_ref[:, :, r:] = mask_ref[...]


# ----------------------------- tiling helpers ------------------------------ #

def _tpu_info():
    """(vmem_capacity_bytes, num_tensorcores) with conservative fallbacks."""
    vmem_cap = 64 << 20          # conservative: v7x per-TC VMEM
    n_tc = 1
    try:
        info = pltpu.get_tpu_info()
        for attr in ("vmem_capacity_bytes", "vmem_bytes"):
            v = getattr(info, attr, None)
            if v:
                vmem_cap = int(v)
                break
        for attr in ("num_cores", "core_count", "num_tensorcores",
                     "tensorcore_count"):
            v = getattr(info, attr, None)
            if v:
                n_tc = int(v)
                break
    except Exception:
        pass
    return vmem_cap, n_tc


def _choose_tiling(B, L, R, H, emb_itemsize, mask_itemsize):
    """Pick batch-rows-per-step (TB) and the scoped-VMEM limit."""
    vmem_cap, n_tc = _tpu_info()

    # Generation-aware output-tile byte target: big VMEM (v5e/v6e, 128 MiB)
    # -> ~8 MiB output tiles; small VMEM (v7x, 64 MiB) -> ~5 MiB.
    out_tile_target = (8 << 20) if vmem_cap >= (96 << 20) else (5 << 20)

    row_out_bytes = (L + R) * H * emb_itemsize
    row_in_bytes = L * H * emb_itemsize
    row_mask_bytes = (L + (R + L)) * mask_itemsize
    per_row = row_in_bytes + row_out_bytes + row_mask_bytes
    reader_bytes = R * H * emb_itemsize

    # VMEM-capacity bound on TB: double-buffered in+out tiles + reader,
    # ~30% headroom for compiler scratch.
    budget = int(vmem_cap * 0.7)
    tb_vmem = max(1, (budget // 2 - 2 * reader_bytes) // max(1, per_row))
    tb_target = max(1, out_tile_target // max(1, row_out_bytes))
    tb = int(max(1, min(B, tb_vmem, tb_target)))

    # Multi-TC chips (v7x): round the step count up to a multiple of the TC
    # count so the "parallel" batch axis shards evenly across cores.
    # Single-TC chips keep the full tile even if that means a 1-step grid.
    if n_tc >= 2 and B >= n_tc:
        steps = pl.cdiv(B, tb)
        steps = ((max(steps, n_tc) + n_tc - 1) // n_tc) * n_tc
        tb = max(1, pl.cdiv(B, steps))
    tb = max(1, min(tb, B))

    # Scoped-VMEM limit must cover the actual double-buffered working set
    # (raises v5e's 16 MiB / v7x's 32 MiB scoped defaults when tiles grow).
    needed = 2 * (tb * per_row + reader_bytes)
    vmem_limit = int(min(int(vmem_cap * 0.75),
                         max(32 << 20, int(needed * 1.25))))
    return tb, vmem_limit


# ----------------------------- wrapper ------------------------------------- #

def ext_memory_forward(embedding, mask, reader):
    """embedding: (B, L, H), mask: (B, L) int, reader: (1, R, H).

    Returns (embedding_out (B, L+R, H), mask_out (B, R+L)).
    Note: readers are appended at the END of the sequence while the mask ones
    are PREPENDED at the FRONT — this matches the PyTorch module exactly.
    Mask dtype follows the input (int32 here vs torch.long upstream).
    """
    B, L, H = embedding.shape
    _, R, _ = reader.shape

    # Keep the mask 3-D with last-two block dims == full array dims so the
    # BlockSpec is legal for any TB.  (H=768 in real ViLT is lane-dense; the
    # tiny demo H only pays masked stores, which is fine for a smoke test.)
    mask3 = mask.reshape(B, 1, L)

    tb, vmem_limit = _choose_tiling(
        B, L, R, H, embedding.dtype.itemsize, mask.dtype.itemsize)
    grid = (pl.cdiv(B, tb),)

    emb_out, mask_out3 = pl.pallas_call(
        ext_memory_kernel,
        out_shape=(
            jax.ShapeDtypeStruct((B, L + R, H), embedding.dtype),
            jax.ShapeDtypeStruct((B, 1, R + L), mask.dtype),
        ),
        grid=grid,
        in_specs=[
            pl.BlockSpec((tb, L, H), lambda b: (b, 0, 0)),   # embedding rows
            pl.BlockSpec((1, R, H), lambda b: (0, 0, 0)),    # shared reader
            pl.BlockSpec((tb, 1, L), lambda b: (b, 0, 0)),   # mask rows
        ],
        out_specs=(
            pl.BlockSpec((tb, L + R, H), lambda b: (b, 0, 0)),
            pl.BlockSpec((tb, 1, R + L), lambda b: (b, 0, 0)),
        ),
        compiler_params=pltpu.CompilerParams(
            dimension_semantics=("parallel",),
            vmem_limit_bytes=vmem_limit,
        ),
    )(embedding, reader, mask3)

    return emb_out, mask_out3.reshape(B, R + L)


# ----------------------------- driver -------------------------------------- #

if __name__ == "__main__":
    B, L, H = 2, 8, 32
    reader_num = 4

    key = jax.random.PRNGKey(0)
    k_emb, k_mask, k_reader = jax.random.split(key, 3)

    embedding = jax.random.normal(k_emb, (B, L, H), dtype=jnp.float32)
    mask = jax.random.bernoulli(k_mask, 0.8, (B, L)).astype(jnp.int32)

    # nn.init.trunc_normal_(mean=0, std=1) truncates at [-2, 2] by default.
    reader = jax.random.truncated_normal(
        k_reader, -2.0, 2.0, (1, reader_num, H), dtype=jnp.float32)

    emb_out, mask_out = ext_memory_forward(embedding, mask, reader)
    jax.block_until_ready((emb_out, mask_out))

    # Pure-JAX reference check.
    ref_emb = jnp.concatenate(
        [embedding, jnp.broadcast_to(reader, (B, reader_num, H))], axis=1)
    ref_mask = jnp.concatenate(
        [jnp.ones((B, reader_num), dtype=jnp.int32), mask], axis=1)

    assert emb_out.shape == (B, L + reader_num, H)
    assert mask_out.shape == (B, reader_num + L)
    assert jnp.allclose(emb_out, ref_emb)
    assert jnp.array_equal(mask_out, ref_mask)

    print("KERNEL_OK")
</pallas_src>

<mosaic_0001>
module attributes {stable_mosaic.version = 11 : i64} {
  func.func @ext_memory_kernel(%arg0: i32, %arg1: memref<2x8x32xf32, #tpu.memory_space<vmem>>, %arg2: memref<1x4x32xf32, #tpu.memory_space<vmem>>, %arg3: memref<2x1x8xi32, #tpu.memory_space<vmem>>, %arg4: memref<2x12x32xf32, #tpu.memory_space<vmem>>, %arg5: memref<2x1x12xi32, #tpu.memory_space<vmem>>) attributes {dimension_semantics = [#tpu.dimension_semantics<parallel>], iteration_bounds = array<i64: 1>, scalar_prefetch = 0 : i64, scratch_operands = 0 : i64, tpu.core_type = #tpu.core_type<tc>, window_params = [{transform_indices = @transform_0, window_bounds = array<i64: 2, 8, 32>}, {pipeline_mode = #tpu.pipeline_mode<synchronous>, transform_indices = @transform_1, window_bounds = array<i64: 1, 4, 32>}, {transform_indices = @transform_2, window_bounds = array<i64: 2, 1, 8>}, {transform_indices = @transform_3, window_bounds = array<i64: 2, 12, 32>}, {transform_indices = @transform_4, window_bounds = array<i64: 2, 1, 12>}]} {
    %c0 = arith.constant 0 : index
    %c0_0 = arith.constant 0 : index
    %c0_1 = arith.constant 0 : index
    %0 = vector.load %arg1[%c0, %c0_0, %c0_1] : memref<2x8x32xf32, #tpu.memory_space<vmem>>, vector<2x8x32xf32>
    %c0_2 = arith.constant 0 : index
    %c0_3 = arith.constant 0 : index
    %c0_4 = arith.constant 0 : index
    %1 = vector.load %arg4[%c0_2, %c0_3, %c0_4] : memref<2x12x32xf32, #tpu.memory_space<vmem>>, vector<2x8x32xf32>
    tpu.vector_store %arg4[%c0_2, %c0_3, %c0_4], %0 {strides = array<i32>} : memref<2x12x32xf32, #tpu.memory_space<vmem>>, vector<2x8x32xf32>,
    %c0_5 = arith.constant 0 : index
    %c0_6 = arith.constant 0 : index
    %c0_7 = arith.constant 0 : index
    %2 = vector.load %arg2[%c0_5, %c0_6, %c0_7] : memref<1x4x32xf32, #tpu.memory_space<vmem>>, vector<1x4x32xf32>
    %3 = vector.shape_cast %2 : vector<1x4x32xf32> to vector<1x4x32xf32>
    %4 = vector.broadcast %3 : vector<1x4x32xf32> to vector<2x4x32xf32>
    %c0_8 = arith.constant 0 : index
    %c8 = arith.constant 8 : index
    %c0_9 = arith.constant 0 : index
    %5 = vector.load %arg4[%c0_8, %c8, %c0_9] : memref<2x12x32xf32, #tpu.memory_space<vmem>>, vector<2x4x32xf32>
    tpu.vector_store %arg4[%c0_8, %c8, %c0_9], %4 {strides = array<i32>} : memref<2x12x32xf32, #tpu.memory_space<vmem>>, vector<2x4x32xf32>,
    %c1_i32 = arith.constant 1 : i32
    %6 = vector.broadcast %c1_i32 : i32 to vector<2x1x4xi32>
    %c0_10 = arith.constant 0 : index
    %c0_11 = arith.constant 0 : index
    %c0_12 = arith.constant 0 : index
    %7 = vector.load %arg5[%c0_10, %c0_11, %c0_12] : memref<2x1x12xi32, #tpu.memory_space<vmem>>, vector<2x1x4xi32>
    tpu.vector_store %arg5[%c0_10, %c0_11, %c0_12], %6 {strides = array<i32>} : memref<2x1x12xi32, #tpu.memory_space<vmem>>, vector<2x1x4xi32>,
    %c0_13 = arith.constant 0 : index
    %c0_14 = arith.constant 0 : index
    %c0_15 = arith.constant 0 : index
    %8 = vector.load %arg3[%c0_13, %c0_14, %c0_15] : memref<2x1x8xi32, #tpu.memory_space<vmem>>, vector<2x1x8xi32>
    %c0_16 = arith.constant 0 : index
    %c0_17 = arith.constant 0 : index
    %c4 = arith.constant 4 : index
    %9 = vector.load %arg5[%c0_16, %c0_17, %c4] : memref<2x1x12xi32, #tpu.memory_space<vmem>>, vector<2x1x8xi32>
    tpu.vector_store %arg5[%c0_16, %c0_17, %c4], %8 {strides = array<i32>} : memref<2x1x12xi32, #tpu.memory_space<vmem>>, vector<2x1x8xi32>,
    return
  }
  func.func @transform_0(%arg0: i32) -> (i32, i32, i32) {
    %c0_i32 = arith.constant 0 : i32
    %c0_i32_0 = arith.constant 0 : i32
    %c0_i32_1 = arith.constant 0 : i32
    return %arg0, %c0_i32, %c0_i32_0 : i32, i32, i32
  }
  func.func @transform_1(%arg0: i32) -> (i32, i32, i32) {
    %c0_i32 = arith.constant 0 : i32
    %c0_i32_0 = arith.constant 0 : i32
    %c0_i32_1 = arith.constant 0 : i32
    %c0_i32_2 = arith.constant 0 : i32
    return %c0_i32, %c0_i32_0, %c0_i32_1 : i32, i32, i32
  }
  func.func @transform_2(%arg0: i32) -> (i32, i32, i32) {
    %c0_i32 = arith.constant 0 : i32
    %c0_i32_0 = arith.constant 0 : i32
    %c0_i32_1 = arith.constant 0 : i32
    return %arg0, %c0_i32, %c0_i32_0 : i32, i32, i32
  }
  func.func @transform_3(%arg0: i32) -> (i32, i32, i32) {
    %c0_i32 = arith.constant 0 : i32
    %c0_i32_0 = arith.constant 0 : i32
    %c0_i32_1 = arith.constant 0 : i32
    return %arg0, %c0_i32, %c0_i32_0 : i32, i32, i32
  }
  func.func @transform_4(%arg0: i32) -> (i32, i32, i32) {
    %c0_i32 = arith.constant 0 : i32
    %c0_i32_0 = arith.constant 0 : i32
    %c0_i32_1 = arith.constant 0 : i32
    return %arg0, %c0_i32, %c0_i32_0 : i32, i32, i32
  }
}

</mosaic_0001>

<llo_original>
// kernel: tpu_custom_call.1
$region0: #{tpu_custom_call.1}
  #allocation0 [shape = 'u32[]', space=smem, size = 0x4, offset = 0x4, fixed_abs, tag = 'smem constant byte address 0x4 - core index']
  #allocation1 [shape = 'u32[144,128]{1,0:T(1,128)}', space=vmem, size = 0x12000, scoped, tag = 'internal scratch']
  %s0 = inlined_call_operand.hbm [shape: f32[2,8,32], index: 0, kind: input, shape index: {}]
  %s1 = inlined_call_operand.hbm [shape: f32[1,4,32], index: 1, kind: input, shape index: {}]
  %s2 = inlined_call_operand.vmem [shape: s32[2,1,8], index: 2, kind: input, shape index: {}]
  %s3 = inlined_call_operand.vmem [shape: f32[2,12,32], index: 3, kind: output, shape index: {0}]
  %s4 = inlined_call_operand.hbm [shape: s32[2,1,12], index: 4, kind: output, shape index: {1}]
  %5 = xla_tuple %s3, %s4
  %s6 = sld [smem:[#allocation0]]
  $region38: #{tpu_custom_call.1} parent=0
    _
  %s8 = ssub.s32 1, %s6
  %s9 = scalar_select 0, %s8, %s6
  $region1: #{tpu_custom_call.1} parent=0
    #allocation2 [shape = 'u8[8192]{0}', space=vmem, size = 0x2000, scoped, tag = 'input window, operand 0, single buffered']
    #allocation3 [shape = 's32[1]{0}', space=sflag, size = 0x4, scoped, tag = 'scoped memory for tpu_custom_call.1']
    #allocation4 [shape = 's32[1]{0}', space=sflag, size = 0x4, scoped, tag = 'scoped memory for tpu_custom_call.1']
    #allocation5 [shape = 'u8[2048]{0}', space=vmem, size = 0x800, scoped, tag = 'input window, operand 1, single buffered']
    #allocation6 [shape = 's32[1]{0}', space=sflag, size = 0x4, scoped, tag = 'scoped memory for tpu_custom_call.1']
    #allocation7 [shape = 'u8[1024]{0}', space=vmem, size = 0x400, scoped, tag = 'output window, operand 1, single buffered']
    %10 = vsyncpa [#allocation3], 0
    %11 = vsyncpa [#allocation6], 0
    %12 = vsyncpa [#allocation4], 0
    // Predicated region
    $region2: #{tpu_custom_call.1} parent=1 // pred_check
      _
    $region3: #{tpu_custom_call.1} parent=1 // pred_check_branch
      %14 = sbr.rel (0) target = $region5
    $region4: #{tpu_custom_call.1} parent=1 // pred_region
      %s16 = ssub.s32 256, 256
      %17 = vsyncadd [#allocation3], %s16
      %s18 = sshll.u32 [#allocation2], 4
      %s19 = int_to_ptr.vmem [resolvable:$true] %s18
      %24 = dma.hbm_to_vmem [thread:$0]  %s0, 256, %s19, [#allocation3], 128, 128, 8
    $region5: #{tpu_custom_call.1} parent=1 // pred_fallthru
      _
    // Predicated region
    $region6: #{tpu_custom_call.1} parent=1 // pred_check
      _
    $region7: #{tpu_custom_call.1} parent=1 // pred_check_branch
      %26 = sbr.rel (0) target = $region9
    $region8: #{tpu_custom_call.1} parent=1 // pred_region
      %s28 = ssub.s32 64, 64
      %29 = vsyncadd [#allocation6], %s28
      %s31 = sshll.u32 [#allocation5], 4
      %s32 = int_to_ptr.vmem [resolvable:$true] %s31
      %34 = dma.hbm_to_vmem [thread:$0]  %s1, 64, %s32, [#allocation6]
    $region9: #{tpu_custom_call.1} parent=1 // pred_fallthru
      _
    // Predicated region
    $region10: #{tpu_custom_call.1} parent=1 // pred_check
      _
    $region11: #{tpu_custom_call.1} parent=1 // pred_check_branch
      %36 = sbr.rel (0) target = $region13
    $region12: #{tpu_custom_call.1} parent=1 // pred_region
      _
    $region13: #{tpu_custom_call.1} parent=1 // pred_fallthru
      _
    // Predicated region
    $region14: #{tpu_custom_call.1} parent=1 // pred_check
      _
    $region15: #{tpu_custom_call.1} parent=1 // pred_check_branch
      %38 = sbr.rel (0) target = $region17
    $region16: #{tpu_custom_call.1} parent=1 // pred_region
      %39 = dma.done [#allocation3], 256
    $region17: #{tpu_custom_call.1} parent=1 // pred_fallthru
      _
    // Predicated region
    $region18: #{tpu_custom_call.1} parent=1 // pred_check
      _
    $region19: #{tpu_custom_call.1} parent=1 // pred_check_branch
      %41 = sbr.rel (0) target = $region21
    $region20: #{tpu_custom_call.1} parent=1 // pred_region
      %42 = dma.done [#allocation6], 64
    $region21: #{tpu_custom_call.1} parent=1 // pred_fallthru
      _
    %v43 = vld [vmem:[#allocation2] sm:$0xff]
    %v44 = vld [vmem:[#allocation2 + $0x8] sm:$0xff]
    %vm45 = vcmask 261120
    %46 = vst.msk [vmem:[%s3] sm:$0xff] %vm45, %v43
    %47 = vst.msk [vmem:[%s3 + $0x10] sm:$0xff] %vm45, %v44
    %v48 = vld [vmem:[#allocation5] sm:$0xf]
    %vm49 = vcmask 257024
    %50 = vst.msk [vmem:[%s3 + $0x8] sm:$0xf] %vm49, %v48
    %51 = vst.msk [vmem:[%s3 + $0x18] sm:$0xf] %vm49, %v48
    %vm52 = vcmask 24576
    %53 = vst.msk [vmem:[#allocation7] sm:$0x1] %vm52, 1
    %54 = vst.msk [vmem:[#allocation7 + $0x1] sm:$0x1] %vm52, 1
    %v55 = vld [vmem:[%s2] sm:$0x1]
    %v56 = vld [vmem:[%s2 + $0x1] sm:$0x1]
    %v57 = vlaneseq
    %v58 = vshrl.u32 %v57, 7
    %v59 = vsub.s32 0, %v58
    %v60 = vrot.slane %v55, %v59
    %v61 = vlaneseq
    %v62 = vshrl.u32 %v61, 7
    %v63 = vsub.s32 0, %v62
    %v64 = vrot.slane %v56, %v63
    %65 = vrot.lane.b32.xlu0 %v60, 4
    %v66 = vpop.permute.xlu0 %65
    %67 = vrot.lane.b32.xlu0 %v64, 4
    %v68 = vpop.permute.xlu0 %67
    %vm69 = vcmask 90144
    %70 = vst.msk [vmem:[#allocation7] sm:$0x1] %vm69, %v66
    %71 = vst.msk [vmem:[#allocation7 + $0x1] sm:$0x1] %vm69, %v68
    // Predicated region
    $region22: #{tpu_custom_call.1} parent=1 // pred_check
      _
    $region23: #{tpu_custom_call.1} parent=1 // pred_check_branch
      %73 = sbr.rel (0) target = $region25
    $region24: #{tpu_custom_call.1} parent=1 // pred_region
      _
    $region25: #{tpu_custom_call.1} parent=1 // pred_fallthru
      _
    // Predicated region
    $region26: #{tpu_custom_call.1} parent=1 // pred_check
      _
    $region27: #{tpu_custom_call.1} parent=1 // pred_check_branch
      %75 = sbr.rel (0) target = $region29
    $region28: #{tpu_custom_call.1} parent=1 // pred_region
      %s77 = ssub.s32 32, 32
      %78 = vsyncadd [#allocation4], %s77
      %s79 = sshll.u32 [#allocation7], 4
      %s80 = int_to_ptr.vmem [resolvable:$true] %s79
      %85 = dma.vmem_to_hbm [thread:$0]  %s80, 32, %s4, [#allocation4], 16, 16, 1
    $region29: #{tpu_custom_call.1} parent=1 // pred_fallthru
      _
    // Predicated region
    $region30: #{tpu_custom_call.1} parent=1 // pred_check
      _
    $region31: #{tpu_custom_call.1} parent=1 // pred_check_branch
      %87 = sbr.rel (0) target = $region33
    $region32: #{tpu_custom_call.1} parent=1 // pred_region
      _
    $region33: #{tpu_custom_call.1} parent=1 // pred_fallthru
      _
    // Predicated region
    $region34: #{tpu_custom_call.1} parent=1 // pred_check
      _
    $region35: #{tpu_custom_call.1} parent=1 // pred_check_branch
      %89 = sbr.rel (0) target = $region37
    $region36: #{tpu_custom_call.1} parent=1 // pred_region
      %90 = dma.done [#allocation4], 32
    $region37: #{tpu_custom_call.1} parent=1 // pred_fallthru
      _
    %91 = vsyncpa [#allocation3], 1
    %92 = vsyncpa [#allocation6], 1
    %93 = vsyncpa [#allocation4], 1

</llo_original>
